<compile_context>
chip_gen: v6e
topology: v6e:2x2x1
jax: 0.10.0
libtpu: 0.0.40
codegen_flags: <defaults>
</compile_context>

<pallas_src>
import functools

import jax
import jax.numpy as jnp
from jax.experimental import pallas as pl
from jax.experimental.pallas import tpu as pltpu


def _round_up(n, m):
    return (n + m - 1) // m * m


# --------------------------------------------------------------------------- kernels


def mlp_kernel_resident(x_ref, w1_ref, w2_ref, b2_ref, o_ref):
    """Whole hidden dim resident in VMEM: single pass, no accumulator scratch."""
    h = jnp.dot(x_ref[...], w1_ref[...], preferred_element_type=jnp.float32)
    y = jnp.dot(h.astype(w2_ref.dtype), w2_ref[...],
                preferred_element_type=jnp.float32)
    o_ref[...] = (y + b2_ref[...]).astype(o_ref.dtype)


def mlp_kernel_chunked(x_ref, w1_ref, w2_ref, b2_ref, o_ref, acc_ref):
    """Hidden dim chunked (reduction grid axis, last); f32 VMEM accumulator."""
    h_idx = pl.program_id(1)

    @pl.when(h_idx == 0)
    def _():
        acc_ref[...] = jnp.zeros_like(acc_ref)

    # Layer 1 hidden chunk: [tb, Dp] @ [Dp, th] -> f32.
    h = jnp.dot(x_ref[...], w1_ref[...], preferred_element_type=jnp.float32)
    # Layer 2 partial product: [tb, th] @ [th, Dp], accumulated in f32 VMEM scratch.
    acc_ref[...] += jnp.dot(h.astype(w2_ref.dtype), w2_ref[...],
                            preferred_element_type=jnp.float32)

    @pl.when(h_idx == pl.num_programs(1) - 1)
    def _():
        o_ref[...] = (acc_ref[...] + b2_ref[...]).astype(o_ref.dtype)


# ------------------------------------------------------------------- tiling selection


def _vmem_capacity_bytes():
    """Per-core VMEM capacity; falls back to device_kind sniffing, then conservative 64 MiB."""
    try:
        info = pltpu.get_tpu_info()
        for name in ("vmem_capacity_bytes", "vmem_size_bytes", "vmem_bytes"):
            cap = getattr(info, name, None)
            if cap:
                return int(cap)
    except Exception:
        pass
    try:
        kind = jax.devices()[0].device_kind.lower()
    except Exception:
        kind = ""
    if "v5" in kind or "v6" in kind:
        return 128 * 1024 * 1024
    return 64 * 1024 * 1024  # v7x / unknown: conservative


def _vmem_usage(tb, th, Dp, out_itemsize, with_acc):
    bf16 = 2
    x_b = 2 * tb * Dp * bf16            # double-buffered x tile
    w_b = 2 * 2 * Dp * th * bf16        # double-buffered w1 + w2 chunks
    o_b = 2 * tb * Dp * out_itemsize    # double-buffered output tile
    acc_b = tb * Dp * 4 if with_acc else 0
    misc = 2 * Dp * 4 + (1 << 20)       # bias + slack
    return x_b + w_b + o_b + acc_b + misc


def _pick_tiles(B, Dp, Hp, out_itemsize, budget):
    bp_min = _round_up(max(B, 1), 128)
    tb_cands = [t for t in (512, 256, 128) if t <= bp_min] or [128]

    # 1) Weight-resident path: th == Hp, weights DMA'd once per core, no acc scratch.
    for tb in tb_cands:
        if _vmem_usage(tb, Hp, Dp, out_itemsize, with_acc=False) <= budget:
            return tb, Hp
    # 2) Chunked reduction over the hidden dim.
    th_cands = [t for t in (512, 256, 128) if t <= Hp and Hp % t == 0] or [Hp]
    for tb in tb_cands:
        for th in th_cands:
            if _vmem_usage(tb, th, Dp, out_itemsize, with_acc=True) <= budget:
                return tb, th
    return tb_cands[-1], th_cands[-1]


# --------------------------------------------------------------------------- wrappers


def prepare_params(w1, b1, w2, b2, compute_dtype=jnp.bfloat16):
    """One-time weight prep: pad to lane-dense shapes, cast matmul operands to bf16,
    and fold b1 into the output bias in f32 (b2' = b1 @ W2 + b2).

    Weight layout is pre-transposed vs. torch: w1=[dim_in, dim_hidden], w2=[dim_hidden, dim_in].
    """
    dim_in, dim_hidden = w1.shape
    assert w2.shape == (dim_hidden, dim_in)
    Dp = _round_up(dim_in, 128)
    Hp = _round_up(dim_hidden, 128)

    f32 = jnp.float32
    w1p = jnp.pad(w1, ((0, Dp - dim_in), (0, Hp - dim_hidden))).astype(compute_dtype)
    w2p = jnp.pad(w2, ((0, Hp - dim_hidden), (0, Dp - dim_in))).astype(compute_dtype)
    b2f = b1.astype(f32) @ w2.astype(f32) + b2.astype(f32)
    b2p = jnp.pad(b2f, (0, Dp - dim_in)).reshape(1, Dp)
    return {"w1": w1p, "w2": w2p, "b2": b2p, "dim_in": dim_in, "dim_hidden": dim_hidden}


@functools.partial(jax.jit, static_argnames=("tb", "th", "resident", "vmem_limit"))
def _mlp_call(x, w1p, w2p, b2p, *, tb, th, resident, vmem_limit):
    B, dim_in = x.shape
    Dp, Hp = w1p.shape
    out_dtype = x.dtype

    Bp = _round_up(B, tb)
    xp = jnp.pad(x, ((0, Bp - B), (0, Dp - dim_in))).astype(w1p.dtype)

    cparams = pltpu.CompilerParams(
        dimension_semantics=("parallel",) if resident else ("parallel", "arbitrary"),
        vmem_limit_bytes=vmem_limit,
    )

    if resident:
        out_p = pl.pallas_call(
            mlp_kernel_resident,
            out_shape=jax.ShapeDtypeStruct((Bp, Dp), out_dtype),
            grid_spec=pltpu.PrefetchScalarGridSpec(
                num_scalar_prefetch=0,
                grid=(Bp // tb,),
                in_specs=[
                    pl.BlockSpec((tb, Dp), lambda i: (i, 0)),   # x tile
                    pl.BlockSpec((Dp, Hp), lambda i: (0, 0)),   # w1 (grid-invariant)
                    pl.BlockSpec((Hp, Dp), lambda i: (0, 0)),   # w2 (grid-invariant)
                    pl.BlockSpec((1, Dp), lambda i: (0, 0)),    # folded bias b2'
                ],
                out_specs=pl.BlockSpec((tb, Dp), lambda i: (i, 0)),
            ),
            compiler_params=cparams,
        )(xp, w1p, w2p, b2p)
    else:
        out_p = pl.pallas_call(
            mlp_kernel_chunked,
            out_shape=jax.ShapeDtypeStruct((Bp, Dp), out_dtype),
            grid_spec=pltpu.PrefetchScalarGridSpec(
                num_scalar_prefetch=0,
                grid=(Bp // tb, Hp // th),
                in_specs=[
                    pl.BlockSpec((tb, Dp), lambda i, h: (i, 0)),  # x tile (reused over h)
                    pl.BlockSpec((Dp, th), lambda i, h: (0, h)),  # w1 hidden chunk
                    pl.BlockSpec((th, Dp), lambda i, h: (h, 0)),  # w2 hidden chunk
                    pl.BlockSpec((1, Dp), lambda i, h: (0, 0)),   # folded bias b2'
                ],
                out_specs=pl.BlockSpec((tb, Dp), lambda i, h: (i, 0)),
                scratch_shapes=[pltpu.VMEM((tb, Dp), jnp.float32)],
            ),
            compiler_params=cparams,
        )(xp, w1p, w2p, b2p)

    return out_p[:B, :dim_in]


def mlp_forward(x, params, *, tb=None, th=None):
    """Forward of SimpleModule. `params` comes from prepare_params; tb/th optional overrides."""
    w1p, w2p, b2p = params["w1"], params["w2"], params["b2"]
    assert x.ndim == 2 and x.shape[1] == params["dim_in"]
    B = x.shape[0]
    Dp, Hp = w1p.shape

    vmem_limit = int(_vmem_capacity_bytes() * 0.8)

    if tb is None and th is None:
        tb, th = _pick_tiles(B, Dp, Hp, jnp.dtype(x.dtype).itemsize, vmem_limit)
        # Prefer >= 2 batch tiles so both v7x TensorCores get work (batch axis is 'parallel').
        while tb > 128 and pl.cdiv(B, tb) < 2:
            tb //= 2
    else:
        assert tb is not None and th is not None, "override both tb and th, or neither"
    assert tb % 8 == 0 and th % 128 == 0 and Hp % th == 0

    resident = (th == Hp)
    return _mlp_call(x, w1p, w2p, b2p, tb=tb, th=th,
                     resident=resident, vmem_limit=vmem_limit)


def init_params(key, dim_in, dim_hidden, dtype=jnp.float32):
    """Mimics torch nn.Linear default init (uniform +/- 1/sqrt(fan_in)).
    Weights stored pre-transposed vs. torch: w1=[dim_in, dim_hidden], w2=[dim_hidden, dim_in]."""
    k1, k2, k3, k4 = jax.random.split(key, 4)
    bound1 = 1.0 / (dim_in ** 0.5)
    bound2 = 1.0 / (dim_hidden ** 0.5)
    w1 = jax.random.uniform(k1, (dim_in, dim_hidden), dtype, -bound1, bound1)
    b1 = jax.random.uniform(k2, (dim_hidden,), dtype, -bound1, bound1)
    w2 = jax.random.uniform(k3, (dim_hidden, dim_in), dtype, -bound2, bound2)
    b2 = jax.random.uniform(k4, (dim_in,), dtype, -bound2, bound2)
    return w1, b1, w2, b2


if __name__ == "__main__":
    # Small-but-tiling-exercising shapes.
    dim_in, dim_hidden, batch = 64, 256, 256

    key = jax.random.PRNGKey(0)
    kx, kp = jax.random.split(key)
    x = jax.random.normal(kx, (batch, dim_in), jnp.float32)
    w1, b1, w2, b2 = init_params(kp, dim_in, dim_hidden)
    params = prepare_params(w1, b1, w2, b2)

    # Auto-picked tiles -> weight-resident fast path (weights tiny here), 2 batch tiles.
    out = jax.block_until_ready(mlp_forward(x, params))
    assert out.shape == (batch, dim_in)
    assert out.dtype == x.dtype

    # Also exercise the chunked-reduction kernel (hidden split into 2 chunks).
    out_chunked = jax.block_until_ready(mlp_forward(x, params, tb=128, th=128))
    assert out_chunked.shape == (batch, dim_in)

    # Reference 1: same cast points as the kernel (bf16 matmul operands, f32 accumulation,
    # b1 folded into the output bias in f32).
    f32 = jnp.float32
    xb, w1b, w2b = (t.astype(jnp.bfloat16) for t in (x, w1, w2))
    h_ref = jnp.dot(xb, w1b, preferred_element_type=f32)
    acc_ref = jnp.dot(h_ref.astype(jnp.bfloat16), w2b, preferred_element_type=f32)
    ref_kernel = acc_ref + (b1.astype(f32) @ w2.astype(f32) + b2.astype(f32))
    for o in (out, out_chunked):
        assert jnp.allclose(o, ref_kernel, atol=1e-2, rtol=1e-2), float(
            jnp.max(jnp.abs(o - ref_kernel)))

    # Reference 2: full-f32 torch-equivalent math, loose tolerance for bf16 matmul operands.
    ref_f32 = (x @ w1 + b1) @ w2 + b2
    for o in (out, out_chunked):
        assert jnp.allclose(o, ref_f32, atol=5e-2, rtol=5e-2), float(
            jnp.max(jnp.abs(o - ref_f32)))

    print("KERNEL_OK")
</pallas_src>

<mosaic_0001>
module attributes {stable_mosaic.version = 11 : i64} {
  func.func @mlp_kernel_resident(%arg0: i32, %arg1: memref<128x128xbf16, #tpu.memory_space<vmem>>, %arg2: memref<128x256xbf16, #tpu.memory_space<vmem>>, %arg3: memref<256x128xbf16, #tpu.memory_space<vmem>>, %arg4: memref<1x128xf32, #tpu.memory_space<vmem>>, %arg5: memref<128x128xf32, #tpu.memory_space<vmem>>) attributes {dimension_semantics = [#tpu.dimension_semantics<parallel>], iteration_bounds = array<i64: 2>, scalar_prefetch = 0 : i64, scratch_operands = 0 : i64, tpu.core_type = #tpu.core_type<tc>, window_params = [{transform_indices = @transform_0, window_bounds = array<i64: 128, 128>}, {pipeline_mode = #tpu.pipeline_mode<synchronous>, transform_indices = @transform_1, window_bounds = array<i64: 128, 256>}, {pipeline_mode = #tpu.pipeline_mode<synchronous>, transform_indices = @transform_2, window_bounds = array<i64: 256, 128>}, {pipeline_mode = #tpu.pipeline_mode<synchronous>, transform_indices = @transform_3, window_bounds = array<i64: 1, 128>}, {transform_indices = @transform_4, window_bounds = array<i64: 128, 128>}]} {
    %c0 = arith.constant 0 : index
    %c0_0 = arith.constant 0 : index
    %0 = vector.load %arg1[%c0, %c0_0] : memref<128x128xbf16, #tpu.memory_space<vmem>>, vector<128x128xbf16>
    %c0_1 = arith.constant 0 : index
    %c0_2 = arith.constant 0 : index
    %1 = vector.load %arg2[%c0_1, %c0_2] : memref<128x256xbf16, #tpu.memory_space<vmem>>, vector<128x256xbf16>
    %cst = arith.constant dense<0.000000e+00> : vector<128x256xf32>
    %2 = tpu.matmul %0, %1, %cst {dimension_numbers = #tpu.dot_dimension_numbers<[1], [0], [0], [1], [0, 0, 1, 1], [], []>} : vector<128x128xbf16>, vector<128x256xbf16>, vector<128x256xf32> -> vector<128x256xf32>
    %3 = arith.truncf %2 : vector<128x256xf32> to vector<128x256xbf16>
    %c0_3 = arith.constant 0 : index
    %c0_4 = arith.constant 0 : index
    %4 = vector.load %arg3[%c0_3, %c0_4] : memref<256x128xbf16, #tpu.memory_space<vmem>>, vector<256x128xbf16>
    %cst_5 = arith.constant dense<0.000000e+00> : vector<128x128xf32>
    %5 = tpu.matmul %3, %4, %cst_5 {dimension_numbers = #tpu.dot_dimension_numbers<[1], [0], [0], [1], [0, 0, 1, 1], [], []>} : vector<128x256xbf16>, vector<256x128xbf16>, vector<128x128xf32> -> vector<128x128xf32>
    %c0_6 = arith.constant 0 : index
    %c0_7 = arith.constant 0 : index
    %6 = vector.load %arg4[%c0_6, %c0_7] : memref<1x128xf32, #tpu.memory_space<vmem>>, vector<1x128xf32>
    %7 = vector.broadcast %6 : vector<1x128xf32> to vector<128x128xf32>
    %8 = arith.addf %5, %7 : vector<128x128xf32>
    %c0_8 = arith.constant 0 : index
    %c0_9 = arith.constant 0 : index
    %9 = vector.load %arg5[%c0_8, %c0_9] : memref<128x128xf32, #tpu.memory_space<vmem>>, vector<128x128xf32>
    tpu.vector_store %arg5[%c0_8, %c0_9], %8 {strides = array<i32>} : memref<128x128xf32, #tpu.memory_space<vmem>>, vector<128x128xf32>,
    return
  }
  func.func @transform_0(%arg0: i32) -> (i32, i32) {
    %c0_i32 = arith.constant 0 : i32
    %c0_i32_0 = arith.constant 0 : i32
    return %arg0, %c0_i32 : i32, i32
  }
  func.func @transform_1(%arg0: i32) -> (i32, i32) {
    %c0_i32 = arith.constant 0 : i32
    %c0_i32_0 = arith.constant 0 : i32
    %c0_i32_1 = arith.constant 0 : i32
    return %c0_i32, %c0_i32_0 : i32, i32
  }
  func.func @transform_2(%arg0: i32) -> (i32, i32) {
    %c0_i32 = arith.constant 0 : i32
    %c0_i32_0 = arith.constant 0 : i32
    %c0_i32_1 = arith.constant 0 : i32
    return %c0_i32, %c0_i32_0 : i32, i32
  }
  func.func @transform_3(%arg0: i32) -> (i32, i32) {
    %c0_i32 = arith.constant 0 : i32
    %c0_i32_0 = arith.constant 0 : i32
    %c0_i32_1 = arith.constant 0 : i32
    return %c0_i32, %c0_i32_0 : i32, i32
  }
  func.func @transform_4(%arg0: i32) -> (i32, i32) {
    %c0_i32 = arith.constant 0 : i32
    %c0_i32_0 = arith.constant 0 : i32
    return %arg0, %c0_i32 : i32, i32
  }
}

</mosaic_0001>

<llo_original>
// kernel: _mlp_call.1
$region0: #{_mlp_call.1}
  #allocation0 [shape = 'u32[]', space=smem, size = 0x4, offset = 0x4, fixed_abs, tag = 'smem constant byte address 0x4 - core index']
  #allocation1 [shape = 'u32[144,128]{1,0:T(1,128)}', space=vmem, size = 0x12000, scoped, tag = 'internal scratch']
  %s0 = inlined_call_operand.vmem [shape: bf16[256,128], index: 0, kind: input, shape index: {}]
  %s1 = inlined_call_operand.vmem [shape: bf16[128,256], index: 1, kind: input, shape index: {}]
  %s2 = inlined_call_operand.vmem [shape: bf16[256,128], index: 2, kind: input, shape index: {}]
  %s3 = inlined_call_operand.vmem [shape: f32[1,128], index: 3, kind: input, shape index: {}]
  %s4 = inlined_call_operand.vmem [shape: f32[256,128], index: 4, kind: output, shape index: {}]
  %s5 = sld [smem:[#allocation0]]
  $region49: #{_mlp_call.1} parent=0
    _
  %s7 = ssub.s32 1, %s5
  %s8 = scalar_select 0, %s7, %s5
  loop: start=0, step=1, limit=4
  $region2: #{_mlp_call.1} parent=0 // loop_pre_header
    _
  $region3: #{_mlp_call.1} parent=0 // loop_header
    %s10 = sphi 0, %s14
    %p11 = scmp.ge.s32.totalorder %s10, 4
    %s20 = sphi 0, %s22
    %s23 = sphi 0, %s20
    %s24 = sphi 0, %s23
    %s40 = sphi 0, %s24
    %s44 = sphi 0, %s44
    %s46 = sphi 0, %s44
    %s47 = sphi 0, %s46
    %s61 = sphi 0, %s47
    %s65 = sphi 0, %s65
    %s67 = sphi 0, %s65
    %s68 = sphi 0, %s67
    %s82 = sphi 0, %s68
    %s86 = sphi 0, %s86
    %s88 = sphi 0, %s86
    %s89 = sphi 0, %s88
    %s103 = sphi 0, %s89
    %s109 = sphi 0, %s111
    %s112 = sphi 0, %s109
    %s113 = sphi 0, %s112
    %s129 = sphi 0, %s113
  $region4: #{_mlp_call.1} parent=0 // loop_header_branch
    %13 = sbr.rel (%p11) target = $region8
  $region5: #{_mlp_call.1} parent=0 // loop_body
    %s15 = ssub.s32 %s10, 1
    %s16 = ssub.s32 %s10, 2
    %s17 = sadd.s32 %s10, 1
    %s18 = ssub.s32 %s10, %s17
    %p19 = scmp.eq.s32.totalorder %s18, 0
    %s21 = sadd.s32 %s20, 1
    %s22 = scalar_select %p19, %s20, %s21
    %p25 = pneg %p19
    %p26 = scmp.eq.s32.totalorder %s10, 1
    %p27 = por %p25, %p26
    %p28 = scmp.ne.s32.totalorder %s20, %s23
    %p29 = scmp.eq.s32.totalorder %s10, 0
    %p30 = por %p28, %p29
    %p31 = scmp.ne.s32.totalorder %s20, %s23
    %p32 = scmp.eq.s32.totalorder %s15, 1
    %p33 = por %p31, %p32
    %p34 = scmp.ne.s32.totalorder %s23, %s24
    %p35 = scmp.eq.s32.totalorder %s15, 0
    %p36 = por %p34, %p35
    %p37 = scmp.ne.s32.totalorder %s23, %s24
    %p38 = scmp.eq.s32.totalorder %s16, 1
    %p39 = por %p37, %p38
    %p41 = scmp.ne.s32.totalorder %s24, %s40
    %p42 = scmp.eq.s32.totalorder %s16, 0
    %p43 = por %p41, %p42
    %s45 = sadd.s32 %s44, 1
    %p48 = scmp.eq.s32.totalorder %s10, 1
    %p49 = scmp.ne.s32.totalorder %s44, %s46
    %p50 = scmp.eq.s32.totalorder %s10, 0
    %p51 = por %p49, %p50
    %p52 = scmp.ne.s32.totalorder %s44, %s46
    %p53 = scmp.eq.s32.totalorder %s15, 1
    %p54 = por %p52, %p53
    %p55 = scmp.ne.s32.totalorder %s46, %s47
    %p56 = scmp.eq.s32.totalorder %s15, 0
    %p57 = por %p55, %p56
    %p58 = scmp.ne.s32.totalorder %s46, %s47
    %p59 = scmp.eq.s32.totalorder %s16, 1
    %p60 = por %p58, %p59
    %p62 = scmp.ne.s32.totalorder %s47, %s61
    %p63 = scmp.eq.s32.totalorder %s16, 0
    %p64 = por %p62, %p63
    %s66 = sadd.s32 %s65, 1
    %p69 = scmp.eq.s32.totalorder %s10, 1
    %p70 = scmp.ne.s32.totalorder %s65, %s67
    %p71 = scmp.eq.s32.totalorder %s10, 0
    %p72 = por %p70, %p71
    %p73 = scmp.ne.s32.totalorder %s65, %s67
    %p74 = scmp.eq.s32.totalorder %s15, 1
    %p75 = por %p73, %p74
    %p76 = scmp.ne.s32.totalorder %s67, %s68
    %p77 = scmp.eq.s32.totalorder %s15, 0
    %p78 = por %p76, %p77
    %p79 = scmp.ne.s32.totalorder %s67, %s68
    %p80 = scmp.eq.s32.totalorder %s16, 1
    %p81 = por %p79, %p80
    %p83 = scmp.ne.s32.totalorder %s68, %s82
    %p84 = scmp.eq.s32.totalorder %s16, 0
    %p85 = por %p83, %p84
    %s87 = sadd.s32 %s86, 1
    %p90 = scmp.eq.s32.totalorder %s10, 1
    %p91 = scmp.ne.s32.totalorder %s86, %s88
    %p92 = scmp.eq.s32.totalorder %s10, 0
    %p93 = por %p91, %p92
    %p94 = scmp.ne.s32.totalorder %s86, %s88
    %p95 = scmp.eq.s32.totalorder %s15, 1
    %p96 = por %p94, %p95
    %p97 = scmp.ne.s32.totalorder %s88, %s89
    %p98 = scmp.eq.s32.totalorder %s15, 0
    %p99 = por %p97, %p98
    %p100 = scmp.ne.s32.totalorder %s88, %s89
    %p101 = scmp.eq.s32.totalorder %s16, 1
    %p102 = por %p100, %p101
    %p104 = scmp.ne.s32.totalorder %s89, %s103
    %p105 = scmp.eq.s32.totalorder %s16, 0
    %p106 = por %p104, %p105
    %s107 = ssub.s32 %s10, %s17
    %p108 = scmp.eq.s32.totalorder %s107, 0
    %s110 = sadd.s32 %s109, 1
    %s111 = scalar_select %p108, %s109, %s110
    %p114 = pneg %p108
    %p115 = scmp.eq.s32.totalorder %s10, 1
    %p116 = por %p114, %p115
    %p117 = scmp.ne.s32.totalorder %s109, %s112
    %p118 = scmp.eq.s32.totalorder %s10, 0
    %p119 = por %p117, %p118
    %p120 = scmp.ne.s32.totalorder %s109, %s112
    %p121 = scmp.eq.s32.totalorder %s15, 1
    %p122 = por %p120, %p121
    %p123 = scmp.ne.s32.totalorder %s112, %s113
    %p124 = scmp.eq.s32.totalorder %s15, 0
    %p125 = por %p123, %p124
    %p126 = scmp.ne.s32.totalorder %s112, %s113
    %p127 = scmp.eq.s32.totalorder %s16, 1
    %p128 = por %p126, %p127
    %p130 = scmp.ne.s32.totalorder %s113, %s129
    %p131 = scmp.eq.s32.totalorder %s16, 0
    %p132 = por %p130, %p131
    %p133 = scmp.le.s32.totalorder 1, %s10
    %p134 = scmp.lt.s32.totalorder %s10, 3
    %p135 = pnand %p133, %p134
    %p136 = pneg %p135
    // Predicated region
    $region9: #{_mlp_call.1} parent=5 // pred_check
      _
    $region10: #{_mlp_call.1} parent=5 // pred_check_branch
      %138 = sbr.rel (%p135) target = $region12
    $region11: #{_mlp_call.1} parent=5 // pred_region
      %s139 = ssub.s32 %s10, 1
      // Predicated region
      $region13: #{_mlp_call.1} parent=11 // pred_check
        %p140 = pneg %p57
      $region14: #{_mlp_call.1} parent=11 // pred_check_branch
        %142 = sbr.rel (%p140) target = $region16
      $region15: #{_mlp_call.1} parent=11 // pred_region
        _
      $region16: #{_mlp_call.1} parent=11 // pred_fallthru
        _
      // Predicated region
      $region17: #{_mlp_call.1} parent=11 // pred_check
        %p143 = pneg %p78
      $region18: #{_mlp_call.1} parent=11 // pred_check_branch
        %145 = sbr.rel (%p143) target = $region20
      $region19: #{_mlp_call.1} parent=11 // pred_region
        _
      $region20: #{_mlp_call.1} parent=11 // pred_fallthru
        _
      // Predicated region
      $region21: #{_mlp_call.1} parent=11 // pred_check
        %p146 = pneg %p99
      $region22: #{_mlp_call.1} parent=11 // pred_check_branch
        %148 = sbr.rel (%p146) target = $region24
      $region23: #{_mlp_call.1} parent=11 // pred_region
        _
      $region24: #{_mlp_call.1} parent=11 // pred_fallthru
        _
    $region12: #{_mlp_call.1} parent=5 // pred_fallthru
      _
    %p149 = scmp.lt.s32.totalorder %s10, 2
    // Predicated region
    $region25: #{_mlp_call.1} parent=5 // pred_check
      %p150 = pneg %p149
    $region26: #{_mlp_call.1} parent=5 // pred_check_branch
      %152 = sbr.rel (%p150) target = $region28
    $region27: #{_mlp_call.1} parent=5 // pred_region
      // Predicated region
      $region29: #{_mlp_call.1} parent=27 // pred_check
        %p153 = pneg %p30
      $region30: #{_mlp_call.1} parent=27 // pred_check_branch
        %155 = sbr.rel (%p153) target = $region32
      $region31: #{_mlp_call.1} parent=27 // pred_region
        %s156 = smul.u32 16, %s10
        %p157 = scmp.lt.s32.totalorder %s156, 31
        %s158 = scalar_select %p157, %s156, 31
        %s159 = smul.addr %s158, 4
        %s160 = scalar_lea.vmem %s0, %s159
        %s161 = smul.u32 16, %s10
      $region32: #{_mlp_call.1} parent=27 // pred_fallthru
        _
    $region28: #{_mlp_call.1} parent=5 // pred_fallthru
      _
    %p162 = scmp.le.s32.totalorder 1, %s10
    %p163 = scmp.lt.s32.totalorder %s10, 3
    %p164 = pnand %p162, %p163
    %p165 = pneg %p164
    // Predicated region
    $region33: #{_mlp_call.1} parent=5 // pred_check
      _
    $region34: #{_mlp_call.1} parent=5 // pred_check_branch
      %167 = sbr.rel (%p164) target = $region36
    $region35: #{_mlp_call.1} parent=5 // pred_region
      %s168 = ssub.s32 %s10, 1
      %s169 = smul.u32 16, %s15
      %p170 = scmp.lt.s32.totalorder %s169, 31
      %s171 = scalar_select %p170, %s169, 31
      %s172 = smul.addr %s171, 4
      %s173 = scalar_lea.vmem %s0, %s172
      %p174 = pneg %p36
      %p175 = pneg %p33
      %p176 = pneg %p57
      %p177 = pneg %p54
      %p178 = pneg %p78
      %p179 = pneg %p75
      %p180 = pneg %p99
      %p181 = pneg %p96
      %p182 = pneg %p125
      %p183 = pneg %p122
      %s184 = smul.u32 16, %s15
      %p185 = scmp.lt.s32.totalorder %s184, 31
      %s186 = scalar_select %p185, %s184, 31
      %s187 = smul.addr %s186, 8
      %s188 = scalar_lea.vmem %s4, %s187
      %s189 = smul.u32 16, %s15
      %p190 = scmp.lt.s32.totalorder %s189, 31
      %s191 = scalar_select %p190, %s189, 31
      %s192 = smul.addr %s191, 4
      %s193 = scalar_lea.vmem %s0, %s192
      %s194 = smul.u32 16, %s15
      %s195 = smul.u32 16, %s15
      %p196 = scmp.lt.s32.totalorder %s195, 31
      %s197 = scalar_select %p196, %s195, 31
      %s198 = smul.addr %s197, 8
      %s199 = scalar_lea.vmem %s4, %s198
      %s200 = smul.u32 16, %s15
      %v202 = vld [vmem:[%s193] sm:$0xf]
      %v203 = vld [vmem:[%s193 + $0x4] sm:$0xf]
      %v204 = vld [vmem:[%s193 + $0x8] sm:$0xf]
      %v205 = vld [vmem:[%s193 + $0xc] sm:$0xf]
      %v206 = vld [vmem:[%s193 + $0x10] sm:$0xf]
      %v207 = vld [vmem:[%s193 + $0x14] sm:$0xf]
      %v208 = vld [vmem:[%s193 + $0x18] sm:$0xf]
      %v209 = vld [vmem:[%s193 + $0x1c] sm:$0xf]
      %v210 = vld [vmem:[%s193 + $0x20] sm:$0xf]
      %v211 = vld [vmem:[%s193 + $0x24] sm:$0xf]
      %v212 = vld [vmem:[%s193 + $0x28] sm:$0xf]
      %v213 = vld [vmem:[%s193 + $0x2c] sm:$0xf]
      %v214 = vld [vmem:[%s193 + $0x30] sm:$0xf]
      %v215 = vld [vmem:[%s193 + $0x34] sm:$0xf]
      %v216 = vld [vmem:[%s193 + $0x38] sm:$0xf]
      %v217 = vld [vmem:[%s193 + $0x3c] sm:$0xf]
      %v218 = vld [vmem:[%s1] sm:$0xff]
      %v219 = vld [vmem:[%s1 + $0x8] sm:$0xff]
      %v220 = vld [vmem:[%s1 + $0x10] sm:$0xff]
      %v221 = vld [vmem:[%s1 + $0x18] sm:$0xff]
      %v222 = vld [vmem:[%s1 + $0x20] sm:$0xff]
      %v223 = vld [vmem:[%s1 + $0x28] sm:$0xff]
      %v224 = vld [vmem:[%s1 + $0x30] sm:$0xff]
      %v225 = vld [vmem:[%s1 + $0x38] sm:$0xff]
      %v226 = vld [vmem:[%s1 + $0x40] sm:$0xff]
      %v227 = vld [vmem:[%s1 + $0x48] sm:$0xff]
      %v228 = vld [vmem:[%s1 + $0x50] sm:$0xff]
      %v229 = vld [vmem:[%s1 + $0x58] sm:$0xff]
      %v230 = vld [vmem:[%s1 + $0x60] sm:$0xff]
      %v231 = vld [vmem:[%s1 + $0x68] sm:$0xff]
      %v232 = vld [vmem:[%s1 + $0x70] sm:$0xff]
      %v233 = vld [vmem:[%s1 + $0x78] sm:$0xff]
      %v250 = vunpack.c.l.b16 %v202
      %v251 = vunpack.c.l.b16 %v203
      %v252 = vunpack.c.l.b16 %v204
      %v253 = vunpack.c.l.b16 %v205
      %v254 = vunpack.c.l.b16 %v206
      %v255 = vunpack.c.l.b16 %v207
      %v256 = vunpack.c.l.b16 %v208
      %v257 = vunpack.c.l.b16 %v209
      %v258 = vunpack.c.l.b16 %v210
      %v259 = vunpack.c.l.b16 %v211
      %v260 = vunpack.c.l.b16 %v212
      %v261 = vunpack.c.l.b16 %v213
      %v262 = vunpack.c.l.b16 %v214
      %v263 = vunpack.c.l.b16 %v215
      %v264 = vunpack.c.l.b16 %v216
      %v265 = vunpack.c.l.b16 %v217
      %v266 = vpack.c.b16 %v251, %v250
      %v267 = vpack.c.b16 %v253, %v252
      %v268 = vpack.c.b16 %v255, %v254
      %v269 = vpack.c.b16 %v257, %v256
      %v270 = vpack.c.b16 %v259, %v258
      %v271 = vpack.c.b16 %v261, %v260
      %v272 = vpack.c.b16 %v263, %v262
      %v273 = vpack.c.b16 %v265, %v264
      %v298 = vunpack.c.l.b16 %v218
      %v299 = vunpack.c.h.b16 %v218
      %v300 = vunpack.c.l.b16 %v219
      %v301 = vunpack.c.h.b16 %v219
      %v302 = vunpack.c.l.b16 %v220
      %v303 = vunpack.c.h.b16 %v220
      %v304 = vunpack.c.l.b16 %v221
      %v305 = vunpack.c.h.b16 %v221
      %v306 = vunpack.c.l.b16 %v222
      %v307 = vunpack.c.h.b16 %v222
      %v308 = vunpack.c.l.b16 %v223
      %v309 = vunpack.c.h.b16 %v223
      %v310 = vunpack.c.l.b16 %v224
      %v311 = vunpack.c.h.b16 %v224
      %v312 = vunpack.c.l.b16 %v225
      %v313 = vunpack.c.h.b16 %v225
      %v314 = vunpack.c.l.b16 %v226
      %v315 = vunpack.c.h.b16 %v226
      %v316 = vunpack.c.l.b16 %v227
      %v317 = vunpack.c.h.b16 %v227
      %v318 = vunpack.c.l.b16 %v228
      %v319 = vunpack.c.h.b16 %v228
      %v320 = vunpack.c.l.b16 %v229
      %v321 = vunpack.c.h.b16 %v229
      %v322 = vunpack.c.l.b16 %v230
      %v323 = vunpack.c.h.b16 %v230
      %v324 = vunpack.c.l.b16 %v231
      %v325 = vunpack.c.h.b16 %v231
      %v326 = vunpack.c.l.b16 %v232
      %v327 = vunpack.c.h.b16 %v232
      %v328 = vunpack.c.l.b16 %v233
      %v329 = vunpack.c.h.b16 %v233
      %v330 = vpack.c.b16 %v300, %v298
      %v331 = vpack.c.b16 %v301, %v299
      %v332 = vpack.c.b16 %v304, %v302
      %v333 = vpack.c.b16 %v305, %v303
      %v334 = vpack.c.b16 %v308, %v306
      %v335 = vpack.c.b16 %v309, %v307
      %v336 = vpack.c.b16 %v312, %v310
      %v337 = vpack.c.b16 %v313, %v311
      %v338 = vpack.c.b16 %v316, %v314
      %v339 = vpack.c.b16 %v317, %v315
      %v340 = vpack.c.b16 %v320, %v318
      %v341 = vpack.c.b16 %v321, %v319
      %v342 = vpack.c.b16 %v324, %v322
      %v343 = vpack.c.b16 %v325, %v323
      %v344 = vpack.c.b16 %v328, %v326
      %v345 = vpack.c.b16 %v329, %v327
      %362 = vmatprep.subr.bf16.mxu0 %v345
      %363 = vmatpush1.bf16.msra.mxu0 %v344
      %364 = vmatprep.subr.bf16.mxu0 %v343
      %365 = vmatpush1.bf16.msra.mxu0 %v342
      %366 = vmatprep.subr.bf16.mxu0 %v341
      %367 = vmatpush1.bf16.msra.mxu0 %v340
      %368 = vmatprep.subr.bf16.mxu0 %v339
      %369 = vmatpush1.bf16.msra.mxu0 %v338
      %370 = vmatprep.subr.bf16.mxu0 %v337
      %371 = vmatpush1.bf16.msra.mxu0 %v336
      %372 = vmatprep.subr.bf16.mxu0 %v335
      %373 = vmatpush1.bf16.msra.mxu0 %v334
      %374 = vmatprep.subr.bf16.mxu0 %v333
      %375 = vmatpush1.bf16.msra.mxu0 %v332
      %376 = vmatprep.subr.bf16.mxu0 %v331
      %377 = vmatpush1.bf16.msra.mxu0 %v330
      %378 = vmatprep.subr.bf16.mxu0 0
      %379 = vmatpush2.bf16.msra.mxu0 0
      %380 = vmatprep.subr.bf16.mxu0 0
      %381 = vmatpush2.bf16.msra.mxu0 0
      %382 = vmatprep.subr.bf16.mxu0 0
      %383 = vmatpush2.bf16.msra.mxu0 0
      %384 = vmatprep.subr.bf16.mxu0 0
      %385 = vmatpush2.bf16.msra.mxu0 0
      %386 = vmatprep.subr.bf16.mxu0 0
      %387 = vmatpush2.bf16.msra.mxu0 0
      %388 = vmatprep.subr.bf16.mxu0 0
      %389 = vmatpush2.bf16.msra.mxu0 0
      %390 = vmatprep.subr.bf16.mxu0 0
      %391 = vmatpush2.bf16.msra.mxu0 0
      %392 = vmatprep.subr.bf16.mxu0 0
      %393 = vmatpush2.bf16.msra.mxu0 0
      %394 = vmatprep.mubr.bf16.mxu0 0
      %395 = vmatmul.mubr.bf16.gmra.mxu0 %v266
      %v396 = vpop.f32.mrf.mxu0
      %v397 = vadd.f32 0.0, %v396
      %v398 = vpop.f32.mrf.mxu0
      %v399 = vadd.f32 0.0, %v398
      %v400 = vpop.f32.mrf.mxu0
      %v401 = vadd.f32 0.0, %v400
      %v402 = vpop.f32.mrf.mxu0
      %v403 = vadd.f32 0.0, %v402
      %404 = vmatprep.mubr.bf16.mxu0 0
      %405 = vmatmul.mubr.bf16.gmra.mxu0 %v267
      %v406 = vpop.f32.mrf.mxu0
      %v407 = vadd.f32 0.0, %v406
      %v408 = vpop.f32.mrf.mxu0
      %v409 = vadd.f32 0.0, %v408
      %v410 = vpop.f32.mrf.mxu0
      %v411 = vadd.f32 0.0, %v410
      %v412 = vpop.f32.mrf.mxu0
      %v413 = vadd.f32 0.0, %v412
      %414 = vmatprep.mubr.bf16.mxu0 0
      %415 = vmatmul.mubr.bf16.gmra.mxu0 %v268
      %v416 = vpop.f32.mrf.mxu0
      %v417 = vadd.f32 0.0, %v416
      %v418 = vpop.f32.mrf.mxu0
      %v419 = vadd.f32 0.0, %v418
      %v420 = vpop.f32.mrf.mxu0
      %v421 = vadd.f32 0.0, %v420
      %v422 = vpop.f32.mrf.mxu0
      %v423 = vadd.f32 0.0, %v422
      %424 = vmatprep.mubr.bf16.mxu0 0
      %425 = vmatmul.mubr.bf16.gmra.mxu0 %v269
      %v426 = vpop.f32.mrf.mxu0
      %v427 = vadd.f32 0.0, %v426
      %v428 = vpop.f32.mrf.mxu0
      %v429 = vadd.f32 0.0, %v428
      %v430 = vpop.f32.mrf.mxu0
      %v431 = vadd.f32 0.0, %v430
      %v432 = vpop.f32.mrf.mxu0
      %v433 = vadd.f32 0.0, %v432
      %434 = vmatprep.mubr.bf16.mxu0 0
      %435 = vmatmul.mubr.bf16.gmra.mxu0 %v270
      %v436 = vpop.f32.mrf.mxu0
      %v437 = vadd.f32 0.0, %v436
      %v438 = vpop.f32.mrf.mxu0
      %v439 = vadd.f32 0.0, %v438
      %v440 = vpop.f32.mrf.mxu0
      %v441 = vadd.f32 0.0, %v440
      %v442 = vpop.f32.mrf.mxu0
      %v443 = vadd.f32 0.0, %v442
      %444 = vmatprep.mubr.bf16.mxu0 0
      %445 = vmatmul.mubr.bf16.gmra.mxu0 %v271
      %v446 = vpop.f32.mrf.mxu0
      %v447 = vadd.f32 0.0, %v446
      %v448 = vpop.f32.mrf.mxu0
      %v449 = vadd.f32 0.0, %v448
      %v450 = vpop.f32.mrf.mxu0
      %v451 = vadd.f32 0.0, %v450
      %v452 = vpop.f32.mrf.mxu0
      %v453 = vadd.f32 0.0, %v452
      %454 = vmatprep.mubr.bf16.mxu0 0
      %455 = vmatmul.mubr.bf16.gmra.mxu0 %v272
      %v456 = vpop.f32.mrf.mxu0
      %v457 = vadd.f32 0.0, %v456
      %v458 = vpop.f32.mrf.mxu0
      %v459 = vadd.f32 0.0, %v458
      %v460 = vpop.f32.mrf.mxu0
      %v461 = vadd.f32 0.0, %v460
      %v462 = vpop.f32.mrf.mxu0
      %v463 = vadd.f32 0.0, %v462
      %464 = vmatprep.mubr.bf16.mxu0 0
      %465 = vmatmul.mubr.bf16.gmra.mxu0 %v273
      %v466 = vpop.f32.mrf.mxu0
      %v467 = vadd.f32 0.0, %v466
      %v468 = vpop.f32.mrf.mxu0
      %v469 = vadd.f32 0.0, %v468
      %v470 = vpop.f32.mrf.mxu0
      %v471 = vadd.f32 0.0, %v470
      %v472 = vpop.f32.mrf.mxu0
      %v473 = vadd.f32 0.0, %v472
      %474 = vdwg.mxu0
      %v475 = vpack.c.bf16 %v401, %v397
      %v476 = vpack.c.bf16 %v403, %v399
      %v477 = vpack.c.bf16 %v411, %v407
      %v478 = vpack.c.bf16 %v413, %v409
      %v479 = vpack.c.bf16 %v421, %v417
      %v480 = vpack.c.bf16 %v423, %v419
      %v481 = vpack.c.bf16 %v431, %v427
      %v482 = vpack.c.bf16 %v433, %v429
      %v483 = vpack.c.bf16 %v441, %v437
      %v484 = vpack.c.bf16 %v443, %v439
      %v485 = vpack.c.bf16 %v451, %v447
      %v486 = vpack.c.bf16 %v453, %v449
      %v487 = vpack.c.bf16 %v461, %v457
      %v488 = vpack.c.bf16 %v463, %v459
      %v489 = vpack.c.bf16 %v471, %v467
      %v490 = vpack.c.bf16 %v473, %v469
      %v491 = vld [vmem:[%s2] sm:$0xf]
      %v492 = vld [vmem:[%s2 + $0x4] sm:$0xf]
      %v493 = vld [vmem:[%s2 + $0x8] sm:$0xf]
      %v494 = vld [vmem:[%s2 + $0xc] sm:$0xf]
      %v495 = vld [vmem:[%s2 + $0x10] sm:$0xf]
      %v496 = vld [vmem:[%s2 + $0x14] sm:$0xf]
      %v497 = vld [vmem:[%s2 + $0x18] sm:$0xf]
      %v498 = vld [vmem:[%s2 + $0x1c] sm:$0xf]
      %v499 = vld [vmem:[%s2 + $0x20] sm:$0xf]
      %v500 = vld [vmem:[%s2 + $0x24] sm:$0xf]
      %v501 = vld [vmem:[%s2 + $0x28] sm:$0xf]
      %v502 = vld [vmem:[%s2 + $0x2c] sm:$0xf]
      %v503 = vld [vmem:[%s2 + $0x30] sm:$0xf]
      %v504 = vld [vmem:[%s2 + $0x34] sm:$0xf]
      %v505 = vld [vmem:[%s2 + $0x38] sm:$0xf]
      %v506 = vld [vmem:[%s2 + $0x3c] sm:$0xf]
      %v507 = vld [vmem:[%s2 + $0x40] sm:$0xf]
      %v508 = vld [vmem:[%s2 + $0x44] sm:$0xf]
      %v509 = vld [vmem:[%s2 + $0x48] sm:$0xf]
      %v510 = vld [vmem:[%s2 + $0x4c] sm:$0xf]
      %v511 = vld [vmem:[%s2 + $0x50] sm:$0xf]
      %v512 = vld [vmem:[%s2 + $0x54] sm:$0xf]
      %v513 = vld [vmem:[%s2 + $0x58] sm:$0xf]
      %v514 = vld [vmem:[%s2 + $0x5c] sm:$0xf]
      %v515 = vld [vmem:[%s2 + $0x60] sm:$0xf]
      %v516 = vld [vmem:[%s2 + $0x64] sm:$0xf]
      %v517 = vld [vmem:[%s2 + $0x68] sm:$0xf]
      %v518 = vld [vmem:[%s2 + $0x6c] sm:$0xf]
      %v519 = vld [vmem:[%s2 + $0x70] sm:$0xf]
      %v520 = vld [vmem:[%s2 + $0x74] sm:$0xf]
      %v521 = vld [vmem:[%s2 + $0x78] sm:$0xf]
      %v522 = vld [vmem:[%s2 + $0x7c] sm:$0xf]
      %v523 = vld [vmem:[%s3] sm:$0x1]
      %v525 = vlaneseq
      %v526 = vshrl.u32 %v525, 7
      %v527 = vsub.s32 0, %v526
      %v528 = vrot.slane %v523, %v527
      %v562 = vunpack.c.l.b16 %v491
      %v563 = vunpack.c.l.b16 %v492
      %v564 = vunpack.c.l.b16 %v493
      %v565 = vunpack.c.l.b16 %v494
      %v566 = vunpack.c.l.b16 %v495
      %v567 = vunpack.c.l.b16 %v496
      %v568 = vunpack.c.l.b16 %v497
      %v569 = vunpack.c.l.b16 %v498
      %v570 = vunpack.c.l.b16 %v499
      %v571 = vunpack.c.l.b16 %v500
      %v572 = vunpack.c.l.b16 %v501
      %v573 = vunpack.c.l.b16 %v502
      %v574 = vunpack.c.l.b16 %v503
      %v575 = vunpack.c.l.b16 %v504
      %v576 = vunpack.c.l.b16 %v505
      %v577 = vunpack.c.l.b16 %v506
      %v578 = vunpack.c.l.b16 %v507
      %v579 = vunpack.c.l.b16 %v508
      %v580 = vunpack.c.l.b16 %v509
      %v581 = vunpack.c.l.b16 %v510
      %v582 = vunpack.c.l.b16 %v511
      %v583 = vunpack.c.l.b16 %v512
      %v584 = vunpack.c.l.b16 %v513
      %v585 = vunpack.c.l.b16 %v514
      %v586 = vunpack.c.l.b16 %v515
      %v587 = vunpack.c.l.b16 %v516
      %v588 = vunpack.c.l.b16 %v517
      %v589 = vunpack.c.l.b16 %v518
      %v590 = vunpack.c.l.b16 %v519
      %v591 = vunpack.c.l.b16 %v520
      %v592 = vunpack.c.l.b16 %v521
      %v593 = vunpack.c.l.b16 %v522
      %v594 = vpack.c.b16 %v563, %v562
      %v595 = vpack.c.b16 %v565, %v564
      %v596 = vpack.c.b16 %v567, %v566
      %v597 = vpack.c.b16 %v569, %v568
      %v598 = vpack.c.b16 %v571, %v570
      %v599 = vpack.c.b16 %v573, %v572
      %v600 = vpack.c.b16 %v575, %v574
      %v601 = vpack.c.b16 %v577, %v576
      %v602 = vpack.c.b16 %v579, %v578
      %v603 = vpack.c.b16 %v581, %v580
      %v604 = vpack.c.b16 %v583, %v582
      %v605 = vpack.c.b16 %v585, %v584
      %v606 = vpack.c.b16 %v587, %v586
      %v607 = vpack.c.b16 %v589, %v588
      %v608 = vpack.c.b16 %v591, %v590
      %v609 = vpack.c.b16 %v593, %v592
      %626 = vmatprep.subr.bf16.mxu0 0
      %627 = vmatpush1.bf16.msra.mxu0 %v601
      %628 = vmatprep.subr.bf16.mxu0 0
      %629 = vmatpush1.bf16.msra.mxu0 %v600
      %630 = vmatprep.subr.bf16.mxu0 0
      %631 = vmatpush1.bf16.msra.mxu0 %v599
      %632 = vmatprep.subr.bf16.mxu0 0
      %633 = vmatpush1.bf16.msra.mxu0 %v598
      %634 = vmatprep.subr.bf16.mxu0 0
      %635 = vmatpush1.bf16.msra.mxu0 %v597
      %636 = vmatprep.subr.bf16.mxu0 0
      %637 = vmatpush1.bf16.msra.mxu0 %v596
      %638 = vmatprep.subr.bf16.mxu0 0
      %639 = vmatpush1.bf16.msra.mxu0 %v595
      %640 = vmatprep.subr.bf16.mxu0 0
      %641 = vmatpush1.bf16.msra.mxu0 %v594
      %642 = vmatprep.subr.bf16.mxu0 0
      %643 = vmatpush2.bf16.msra.mxu0 %v609
      %644 = vmatprep.subr.bf16.mxu0 0
      %645 = vmatpush2.bf16.msra.mxu0 %v608
      %646 = vmatprep.subr.bf16.mxu0 0
      %647 = vmatpush2.bf16.msra.mxu0 %v607
      %648 = vmatprep.subr.bf16.mxu0 0
      %649 = vmatpush2.bf16.msra.mxu0 %v606
      %650 = vmatprep.subr.bf16.mxu0 0
      %651 = vmatpush2.bf16.msra.mxu0 %v605
      %652 = vmatprep.subr.bf16.mxu0 0
      %653 = vmatpush2.bf16.msra.mxu0 %v604
      %654 = vmatprep.subr.bf16.mxu0 0
      %655 = vmatpush2.bf16.msra.mxu0 %v603
      %656 = vmatprep.subr.bf16.mxu0 0
      %657 = vmatpush2.bf16.msra.mxu0 %v602
      %658 = vmatprep.mubr.bf16.mxu0 %v476
      %659 = vmatmul.mubr.bf16.gmra.mxu0 %v475
      %v660 = vpop.f32.mrf.mxu0
      %v661 = vadd.f32 %v528, %v660
      %v662 = vpop.f32.mrf.mxu0
      %v663 = vpop.f32.mrf.mxu0
      %v664 = vadd.f32 %v528, %v663
      %v665 = vpop.f32.mrf.mxu0
      %666 = vmatprep.mubr.bf16.mxu0 %v478
      %667 = vmatmul.mubr.bf16.gmra.mxu0 %v477
      %v668 = vpop.f32.mrf.mxu0
      %v669 = vadd.f32 %v528, %v668
      %v670 = vpop.f32.mrf.mxu0
      %v671 = vpop.f32.mrf.mxu0
      %v672 = vadd.f32 %v528, %v671
      %v673 = vpop.f32.mrf.mxu0
      %674 = vmatprep.mubr.bf16.mxu0 %v480
      %675 = vmatmul.mubr.bf16.gmra.mxu0 %v479
      %v676 = vpop.f32.mrf.mxu0
      %v677 = vadd.f32 %v528, %v676
      %v678 = vpop.f32.mrf.mxu0
      %v679 = vpop.f32.mrf.mxu0
      %v680 = vadd.f32 %v528, %v679
      %v681 = vpop.f32.mrf.mxu0
      %682 = vmatprep.mubr.bf16.mxu0 %v482
      %683 = vmatmul.mubr.bf16.gmra.mxu0 %v481
      %v684 = vpop.f32.mrf.mxu0
      %v685 = vadd.f32 %v528, %v684
      %v686 = vpop.f32.mrf.mxu0
      %v687 = vpop.f32.mrf.mxu0
      %v688 = vadd.f32 %v528, %v687
      %v689 = vpop.f32.mrf.mxu0
      %690 = vmatprep.mubr.bf16.mxu0 %v484
      %691 = vmatmul.mubr.bf16.gmra.mxu0 %v483
      %v692 = vpop.f32.mrf.mxu0
      %v693 = vadd.f32 %v528, %v692
      %v694 = vpop.f32.mrf.mxu0
      %v695 = vpop.f32.mrf.mxu0
      %v696 = vadd.f32 %v528, %v695
      %v697 = vpop.f32.mrf.mxu0
      %698 = vmatprep.mubr.bf16.mxu0 %v486
      %699 = vmatmul.mubr.bf16.gmra.mxu0 %v485
      %v700 = vpop.f32.mrf.mxu0
      %v701 = vadd.f32 %v528, %v700
      %v702 = vpop.f32.mrf.mxu0
      %v703 = vpop.f32.mrf.mxu0
      %v704 = vadd.f32 %v528, %v703
      %v705 = vpop.f32.mrf.mxu0
      %706 = vmatprep.mubr.bf16.mxu0 %v488
      %707 = vmatmul.mubr.bf16.gmra.mxu0 %v487
      %v708 = vpop.f32.mrf.mxu0
      %v709 = vadd.f32 %v528, %v708
      %v710 = vpop.f32.mrf.mxu0
      %v711 = vpop.f32.mrf.mxu0
      %v712 = vadd.f32 %v528, %v711
      %v713 = vpop.f32.mrf.mxu0
      %714 = vmatprep.mubr.bf16.mxu0 %v490
      %715 = vmatmul.mubr.bf16.gmra.mxu0 %v489
      %v716 = vpop.f32.mrf.mxu0
      %v717 = vadd.f32 %v528, %v716
      %v718 = vpop.f32.mrf.mxu0
      %v719 = vpop.f32.mrf.mxu0
      %v720 = vadd.f32 %v528, %v719
      %v721 = vpop.f32.mrf.mxu0
      %722 = vdwg.mxu0
      %723 = vst [vmem:[%s199] sm:$0xff] %v661
      %724 = vst [vmem:[%s199 + $0x8] sm:$0xff] %v664
      %725 = vst [vmem:[%s199 + $0x10] sm:$0xff] %v669
      %726 = vst [vmem:[%s199 + $0x18] sm:$0xff] %v672
      %727 = vst [vmem:[%s199 + $0x20] sm:$0xff] %v677
      %728 = vst [vmem:[%s199 + $0x28] sm:$0xff] %v680
      %729 = vst [vmem:[%s199 + $0x30] sm:$0xff] %v685
      %730 = vst [vmem:[%s199 + $0x38] sm:$0xff] %v688
      %731 = vst [vmem:[%s199 + $0x40] sm:$0xff] %v693
      %732 = vst [vmem:[%s199 + $0x48] sm:$0xff] %v696
      %733 = vst [vmem:[%s199 + $0x50] sm:$0xff] %v701
      %734 = vst [vmem:[%s199 + $0x58] sm:$0xff] %v704
      %735 = vst [vmem:[%s199 + $0x60] sm:$0xff] %v709
      %736 = vst [vmem:[%s199 + $0x68] sm:$0xff] %v712
      %737 = vst [vmem:[%s199 + $0x70] sm:$0xff] %v717
      %738 = vst [vmem:[%s199 + $0x78] sm:$0xff] %v720
      %s739 = smul.u32 16, %s15
      %p740 = scmp.lt.s32.totalorder %s739, 31
      %s741 = scalar_select %p740, %s739, 31
      %s742 = smul.addr %s741, 8
      %s743 = scalar_lea.vmem %s4, %s742
      // Predicated region
      $region37: #{_mlp_call.1} parent=35 // pred_check
        %p744 = pneg %p122
      $region38: #{_mlp_call.1} parent=35 // pred_check_branch
        %746 = sbr.rel (%p744) target = $region40
      $region39: #{_mlp_call.1} parent=35 // pred_region
        %s747 = smul.u32 16, %s15
      $region40: #{_mlp_call.1} parent=35 // pred_fallthru
        _
    $region36: #{_mlp_call.1} parent=5 // pred_fallthru
      _
    %p748 = scmp.le.s32.totalorder 2, %s10
    // Predicated region
    $region41: #{_mlp_call.1} parent=5 // pred_check
      %p749 = pneg %p748
    $region42: #{_mlp_call.1} parent=5 // pred_check_branch
      %751 = sbr.rel (%p749) target = $region44
    $region43: #{_mlp_call.1} parent=5 // pred_region
      %s752 = ssub.s32 %s10, 2
      // Predicated region
      $region45: #{_mlp_call.1} parent=43 // pred_check
        %p753 = pneg %p128
      $region46: #{_mlp_call.1} parent=43 // pred_check_branch
        %755 = sbr.rel (%p753) target = $region48
      $region47: #{_mlp_call.1} parent=43 // pred_region
        %s756 = smul.u32 16, %s16
        %p757 = scmp.lt.s32.totalorder %s756, 31
        %s758 = scalar_select %p757, %s756, 31
        %s759 = smul.addr %s758, 8
        %s760 = scalar_lea.vmem %s4, %s759
      $region48: #{_mlp_call.1} parent=43 // pred_fallthru
        _
    $region44: #{_mlp_call.1} parent=5 // pred_fallthru
      _
  $region6: #{_mlp_call.1} parent=0 // loop_footer
    %s14 = sadd.s32 1, %s10
  $region7: #{_mlp_call.1} parent=0 // loop_footer_branch
    %9 = sbr.rel target = $region3
  $region8: #{_mlp_call.1} parent=0 // loop_exit
    _

</llo_original>
